<compile_context>
chip_gen: v5e
topology: v5e:2x2
jax: 0.10.0
libtpu: 0.0.40
codegen_flags: <defaults>
</compile_context>

<pallas_src>
import functools

import jax
import jax.numpy as jnp
import numpy as np
from jax.experimental import pallas as pl
from jax.experimental.pallas import tpu as pltpu

BN_EPS = 1e-5


def _round_up(x, m):
    return ((x + m - 1) // m) * m


def _vmem_limit_bytes():
    # Per-generation scoped-VMEM budget: ~3/4 of physical capacity, capped at
    # 96 MiB (-> ~96 MiB on 128-MiB v5e/v6e, 48 MiB on 64-MiB v7x).
    try:
        cap = pltpu.get_tpu_info().vmem_capacity_bytes
        return int(min(cap * 3 // 4, 96 * 1024 * 1024))
    except Exception:
        return 32 * 1024 * 1024


# ----------------------------------------------------------------------------
# Direct-conv kernel: one output row per grid step, kh taps on the reduction
# grid axis, kw taps as static in-kernel slices + MXU dots, fused epilogue
#   acc + bias [+ residual] [-> ReLU]     (BN scale pre-folded into W).
# ----------------------------------------------------------------------------
def _conv_row_kernel(x_ref, w_ref, b_ref, *rest, kw_taps, wo, stride, relu,
                     has_residual, multi_kh):
    i = 0
    r_ref = None
    if has_residual:
        r_ref = rest[i]
        i += 1
    o_ref = rest[i]
    i += 1
    acc_ref = rest[i] if multi_kh else None

    def taps():
        acc = None
        for kw in range(kw_taps):  # static python loop (KW is small)
            if stride == 1:
                a = x_ref[0, 0, pl.ds(kw, wo), :]
            else:
                a = x_ref[0, 0, pl.ds(kw, wo, stride=stride), :]
            d = jnp.dot(a, w_ref[0, kw], preferred_element_type=jnp.float32)
            acc = d if acc is None else acc + d
        return acc

    def epilogue(acc):
        out = acc + b_ref[...]
        if has_residual:
            out = out + r_ref[0, 0].astype(jnp.float32)
        if relu:
            out = jnp.maximum(out, 0.0)
        o_ref[0, 0] = out.astype(o_ref.dtype)

    if multi_kh:
        kh = pl.program_id(2)

        @pl.when(kh == 0)
        def _():
            acc_ref[...] = jnp.zeros_like(acc_ref)

        acc_ref[...] += taps()

        @pl.when(kh == pl.num_programs(2) - 1)
        def _():
            epilogue(acc_ref[...])
    else:
        # Single-tap-row fast path (1x1 conv): no scratch, no zero-fill pass.
        epilogue(taps())


def conv_bn_act(x_nhwc, w_taps, bias, *, stride=1, relu=True, residual=None,
                out_dtype=jnp.bfloat16):
    """Fused conv2d + folded-BN bias (+ residual) (+ ReLU).

    x_nhwc  : (N, Hp, Wp, Cin)      spatially pre-padded activations (bf16)
    w_taps  : (KH, KW, Cin, Cout_p) bf16, BN scale folded, Cout_p % 128 == 0
    bias    : (Cout_p,)             f32 folded BN bias
    residual: optional (N, Ho, Wo, Cout_p) f32, added before the ReLU
    """
    N, Hp, Wp, Cin = x_nhwc.shape
    KH, KW, Cin_w, Cout_p = w_taps.shape
    assert Cin_w == Cin and Cout_p % 128 == 0
    Ho = (Hp - KH) // stride + 1
    Wo = (Wp - KW) // stride + 1

    multi_kh = KH > 1
    has_res = residual is not None

    in_specs = [
        # One padded input row: row index = out_row*stride + kh (block size 1
        # along N and H, so the index_map can return arbitrary row offsets).
        pl.BlockSpec((1, 1, Wp, Cin),
                     lambda n, h, kh: (n, h * stride + kh, 0, 0)),
        # Weight row for tap kh.
        pl.BlockSpec((1, KW, Cin, Cout_p), lambda n, h, kh: (kh, 0, 0, 0)),
        # Folded BN bias (block never changes).
        pl.BlockSpec((1, Cout_p), lambda n, h, kh: (0, 0)),
    ]
    args = [x_nhwc, w_taps, bias.astype(jnp.float32).reshape(1, Cout_p)]
    if has_res:
        in_specs.append(
            pl.BlockSpec((1, 1, Wo, Cout_p), lambda n, h, kh: (n, h, 0, 0)))
        args.append(residual)

    kernel = functools.partial(
        _conv_row_kernel, kw_taps=KW, wo=Wo, stride=stride, relu=relu,
        has_residual=has_res, multi_kh=multi_kh)

    scratch = [pltpu.VMEM((Wo, Cout_p), jnp.float32)] if multi_kh else []

    return pl.pallas_call(
        kernel,
        out_shape=jax.ShapeDtypeStruct((N, Ho, Wo, Cout_p), out_dtype),
        grid=(N, Ho, KH),
        in_specs=in_specs,
        out_specs=pl.BlockSpec((1, 1, Wo, Cout_p),
                               lambda n, h, kh: (n, h, 0, 0)),
        scratch_shapes=scratch,
        compiler_params=pltpu.CompilerParams(
            dimension_semantics=("parallel", "parallel", "arbitrary"),
            vmem_limit_bytes=_vmem_limit_bytes()),
    )(*args)


# ----------------------------------------------------------------------------
# Plain-JAX glue: BN folding, weight re-layout
# ----------------------------------------------------------------------------
def _fold_bn(bn):
    scale = bn["gamma"] / jnp.sqrt(bn["var"] + BN_EPS)
    bias = bn["beta"] - bn["mean"] * scale
    return scale, bias


def _prep_weight(w_oihw, scale, cin_pad, cout_pad):
    # (Cout, Cin, KH, KW) -> (KH, KW, Cin, Cout) with the BN scale folded into
    # the Cout columns; zero-pad Cin (to match channel-padded activations) and
    # Cout (lane-dense multiple of 128).  Zero pads contribute nothing.
    cout, cin = w_oihw.shape[0], w_oihw.shape[1]
    w = jnp.transpose(w_oihw, (2, 3, 1, 0)) * scale[None, None, None, :]
    w = jnp.pad(w, ((0, 0), (0, 0), (0, cin_pad - cin), (0, cout_pad - cout)))
    return w.astype(jnp.bfloat16)


# ----------------------------------------------------------------------------
# BasicBlock forward (NCHW in / NCHW out, like the PyTorch module, eval-mode BN)
# ----------------------------------------------------------------------------
def basic_block_forward(x_nchw, params, stride=1, padding=1):
    N, Cin, H, W = x_nchw.shape
    Cmid = params["w1"].shape[0]
    Cout = params["w2"].shape[0]
    Cin_p = _round_up(Cin, 8)        # sublane-align the (small) GEMM K dim
    Cmid_p = _round_up(Cmid, 128)    # lane-dense inter-conv activations
    Cout_p = _round_up(Cout, 128)

    x_f32 = jnp.transpose(x_nchw, (0, 2, 3, 1))                  # NHWC f32
    x_bf16 = jnp.pad(x_f32, ((0, 0), (0, 0), (0, 0), (0, Cin_p - Cin))
                     ).astype(jnp.bfloat16)

    # ---- conv1 + bn1 + relu1 ----
    s1, b1 = _fold_bn(params["bn1"])
    w1 = _prep_weight(params["w1"], s1, Cin_p, Cmid_p)
    b1p = jnp.pad(b1, (0, Cmid_p - Cmid))
    x1 = jnp.pad(x_bf16, ((0, 0), (padding, padding), (padding, padding), (0, 0)))
    out1 = conv_bn_act(x1, w1, b1p, stride=stride, relu=True)    # (N,Ho,Wo,Cmid_p) bf16
    Ho, Wo = out1.shape[1], out1.shape[2]

    # ---- shortcut (kept in f32 for the residual add) ----
    if stride != 1 or Cout != Cin:
        ss, bs = _fold_bn(params["bns"])
        ws = _prep_weight(params["ws"], ss, Cin_p, Cout_p)       # 1x1 conv
        bsp = jnp.pad(bs, (0, Cout_p - Cout))
        short = conv_bn_act(x_bf16, ws, bsp, stride=stride, relu=False,
                            out_dtype=jnp.float32)               # (N,Ho,Wo,Cout_p) f32
    else:
        short = jnp.pad(x_f32, ((0, 0), (0, 0), (0, 0), (0, Cout_p - Cin)))

    # ---- conv2 + bn2 + residual add + relu2 (single fused kernel) ----
    s2, b2 = _fold_bn(params["bn2"])
    w2 = _prep_weight(params["w2"], s2, Cmid_p, Cout_p)
    b2p = jnp.pad(b2, (0, Cout_p - Cout))
    x2 = jnp.pad(out1, ((0, 0), (padding, padding), (padding, padding), (0, 0)))
    out2 = conv_bn_act(x2, w2, b2p, stride=1, relu=True, residual=short)

    out = out2[..., :Cout].astype(jnp.float32)                   # (N,Ho,Wo,Cout)
    return jnp.transpose(out, (0, 3, 1, 2))                      # NCHW


# ----------------------------------------------------------------------------
# Pure-JAX reference (lax.conv, f32) for correctness check
# ----------------------------------------------------------------------------
def _ref_forward(x, params, stride, padding):
    def conv(x, w, s, p):
        return jax.lax.conv_general_dilated(
            x, w, (s, s), [(p, p), (p, p)],
            dimension_numbers=("NCHW", "OIHW", "NCHW"))

    def bn(x, bnp):
        scale = bnp["gamma"] / jnp.sqrt(bnp["var"] + BN_EPS)
        bias = bnp["beta"] - bnp["mean"] * scale
        return x * scale[None, :, None, None] + bias[None, :, None, None]

    Cin, Cout = x.shape[1], params["w2"].shape[0]
    out = jax.nn.relu(bn(conv(x, params["w1"], stride, padding), params["bn1"]))
    out = bn(conv(out, params["w2"], 1, padding), params["bn2"])
    if stride != 1 or Cout != Cin:
        short = bn(conv(x, params["ws"], stride, 0), params["bns"])
    else:
        short = x
    return jax.nn.relu(out + short)


# ----------------------------------------------------------------------------
# Deterministic parameter construction
# ----------------------------------------------------------------------------
def make_params(key, in_channel, mid_channel, out_channel, ksize=3):
    ks = jax.random.split(key, 8)

    def bn_params(k, c):
        k1, k2, k3, k4 = jax.random.split(k, 4)
        return {
            "gamma": 1.0 + 0.1 * jax.random.normal(k1, (c,), jnp.float32),
            "beta": 0.1 * jax.random.normal(k2, (c,), jnp.float32),
            "mean": 0.05 * jax.random.normal(k3, (c,), jnp.float32),
            "var": 1.0 + 0.1 * jax.random.uniform(k4, (c,), jnp.float32),
        }

    return {
        "w1": 0.1 * jax.random.normal(ks[0], (mid_channel, in_channel, ksize, ksize), jnp.float32),
        "bn1": bn_params(ks[1], mid_channel),
        "w2": 0.1 * jax.random.normal(ks[2], (out_channel, mid_channel, ksize, ksize), jnp.float32),
        "bn2": bn_params(ks[3], out_channel),
        "ws": 0.1 * jax.random.normal(ks[4], (out_channel, in_channel, 1, 1), jnp.float32),
        "bns": bn_params(ks[5], out_channel),
    }


if __name__ == "__main__":
    key = jax.random.PRNGKey(0)
    k_x, k_p = jax.random.split(key)

    N, Cin, H, W = 2, 4, 16, 16
    Cmid, Cout = 8, 8
    stride, padding = 1, 1   # Cout != Cin -> the 1x1 conv shortcut path is exercised

    x = jax.random.normal(k_x, (N, Cin, H, W), jnp.float32)
    params = make_params(k_p, Cin, Cmid, Cout)

    out = basic_block_forward(x, params, stride=stride, padding=padding)
    out = jax.block_until_ready(out)

    ref = jax.block_until_ready(_ref_forward(x, params, stride, padding))
    assert out.shape == ref.shape, (out.shape, ref.shape)
    # bf16 MXU inputs / bf16 inter-kernel activations (residual kept f32).
    np.testing.assert_allclose(np.asarray(out), np.asarray(ref), rtol=5e-2, atol=5e-2)

    print("KERNEL_OK")
</pallas_src>

<mosaic_0001>
module attributes {stable_mosaic.version = 11 : i64} {
  func.func @_conv_row_kernel(%arg0: i32, %arg1: i32, %arg2: i32, %arg3: memref<1x1x18x8xbf16, #tpu.memory_space<vmem>>, %arg4: memref<1x3x8x128xbf16, #tpu.memory_space<vmem>>, %arg5: memref<1x128xf32, #tpu.memory_space<vmem>>, %arg6: memref<1x1x16x128xbf16, #tpu.memory_space<vmem>>, %arg7: memref<16x128xf32, #tpu.memory_space<vmem>>) attributes {dimension_semantics = [#tpu.dimension_semantics<parallel>, #tpu.dimension_semantics<parallel>, #tpu.dimension_semantics<arbitrary>], iteration_bounds = array<i64: 2, 16, 3>, scalar_prefetch = 0 : i64, scratch_operands = 1 : i64, tpu.core_type = #tpu.core_type<tc>, window_params = [{transform_indices = @transform_0, window_bounds = array<i64: 1, 1, 18, 8>}, {transform_indices = @transform_1, window_bounds = array<i64: 1, 3, 8, 128>}, {pipeline_mode = #tpu.pipeline_mode<synchronous>, transform_indices = @transform_2, window_bounds = array<i64: 1, 128>}, {transform_indices = @transform_3, window_bounds = array<i64: 1, 1, 16, 128>}]} {
    %c0_i32 = arith.constant 0 : i32
    %0 = arith.cmpi eq, %arg2, %c0_i32 : i32
    %1 = arith.extui %0 : i1 to i32
    %c0_i32_0 = arith.constant 0 : i32
    %2 = arith.cmpi ne, %1, %c0_i32_0 : i32
    scf.if %2 {
      %cst_29 = arith.constant 0.000000e+00 : f32
      %26 = vector.broadcast %cst_29 : f32 to vector<16x128xf32>
      %c0_30 = arith.constant 0 : index
      %c0_31 = arith.constant 0 : index
      %27 = vector.load %arg7[%c0_30, %c0_31] : memref<16x128xf32, #tpu.memory_space<vmem>>, vector<16x128xf32>
      tpu.vector_store %arg7[%c0_30, %c0_31], %26 {strides = array<i32>} : memref<16x128xf32, #tpu.memory_space<vmem>>, vector<16x128xf32>,
    } else {
    }
    %c0 = arith.constant 0 : index
    %c0_1 = arith.constant 0 : index
    %3 = vector.load %arg7[%c0, %c0_1] : memref<16x128xf32, #tpu.memory_space<vmem>>, vector<16x128xf32>
    %c0_2 = arith.constant 0 : index
    %c0_3 = arith.constant 0 : index
    %c0_4 = arith.constant 0 : index
    %c0_5 = arith.constant 0 : index
    %4 = vector.load %arg3[%c0_2, %c0_3, %c0_4, %c0_5] : memref<1x1x18x8xbf16, #tpu.memory_space<vmem>>, vector<1x1x16x8xbf16>
    %5 = vector.shape_cast %4 : vector<1x1x16x8xbf16> to vector<16x8xbf16>
    %c0_6 = arith.constant 0 : index
    %c0_7 = arith.constant 0 : index
    %c0_8 = arith.constant 0 : index
    %c0_9 = arith.constant 0 : index
    %6 = vector.load %arg4[%c0_6, %c0_7, %c0_8, %c0_9] : memref<1x3x8x128xbf16, #tpu.memory_space<vmem>>, vector<1x1x8x128xbf16>
    %7 = vector.shape_cast %6 : vector<1x1x8x128xbf16> to vector<8x128xbf16>
    %cst = arith.constant dense<0.000000e+00> : vector<16x128xf32>
    %8 = tpu.matmul %5, %7, %cst {dimension_numbers = #tpu.dot_dimension_numbers<[1], [0], [0], [1], [0, 0, 1, 1], [], []>} : vector<16x8xbf16>, vector<8x128xbf16>, vector<16x128xf32> -> vector<16x128xf32>
    %c0_10 = arith.constant 0 : index
    %c0_11 = arith.constant 0 : index
    %c1 = arith.constant 1 : index
    %c0_12 = arith.constant 0 : index
    %9 = vector.load %arg3[%c0_10, %c0_11, %c1, %c0_12] : memref<1x1x18x8xbf16, #tpu.memory_space<vmem>>, vector<1x1x16x8xbf16>
    %10 = vector.shape_cast %9 : vector<1x1x16x8xbf16> to vector<16x8xbf16>
    %c0_13 = arith.constant 0 : index
    %c1_14 = arith.constant 1 : index
    %c0_15 = arith.constant 0 : index
    %c0_16 = arith.constant 0 : index
    %11 = vector.load %arg4[%c0_13, %c1_14, %c0_15, %c0_16] : memref<1x3x8x128xbf16, #tpu.memory_space<vmem>>, vector<1x1x8x128xbf16>
    %12 = vector.shape_cast %11 : vector<1x1x8x128xbf16> to vector<8x128xbf16>
    %cst_17 = arith.constant dense<0.000000e+00> : vector<16x128xf32>
    %13 = tpu.matmul %10, %12, %cst_17 {dimension_numbers = #tpu.dot_dimension_numbers<[1], [0], [0], [1], [0, 0, 1, 1], [], []>} : vector<16x8xbf16>, vector<8x128xbf16>, vector<16x128xf32> -> vector<16x128xf32>
    %14 = arith.addf %8, %13 : vector<16x128xf32>
    %c0_18 = arith.constant 0 : index
    %c0_19 = arith.constant 0 : index
    %c2 = arith.constant 2 : index
    %c0_20 = arith.constant 0 : index
    %15 = vector.load %arg3[%c0_18, %c0_19, %c2, %c0_20] : memref<1x1x18x8xbf16, #tpu.memory_space<vmem>>, vector<1x1x16x8xbf16>
    %16 = vector.shape_cast %15 : vector<1x1x16x8xbf16> to vector<16x8xbf16>
    %c0_21 = arith.constant 0 : index
    %c2_22 = arith.constant 2 : index
    %c0_23 = arith.constant 0 : index
    %c0_24 = arith.constant 0 : index
    %17 = vector.load %arg4[%c0_21, %c2_22, %c0_23, %c0_24] : memref<1x3x8x128xbf16, #tpu.memory_space<vmem>>, vector<1x1x8x128xbf16>
    %18 = vector.shape_cast %17 : vector<1x1x8x128xbf16> to vector<8x128xbf16>
    %cst_25 = arith.constant dense<0.000000e+00> : vector<16x128xf32>
    %19 = tpu.matmul %16, %18, %cst_25 {dimension_numbers = #tpu.dot_dimension_numbers<[1], [0], [0], [1], [0, 0, 1, 1], [], []>} : vector<16x8xbf16>, vector<8x128xbf16>, vector<16x128xf32> -> vector<16x128xf32>
    %20 = arith.addf %14, %19 : vector<16x128xf32>
    %21 = arith.addf %3, %20 : vector<16x128xf32>
    %c0_26 = arith.constant 0 : index
    %c0_27 = arith.constant 0 : index
    %22 = vector.load %arg7[%c0_26, %c0_27] : memref<16x128xf32, #tpu.memory_space<vmem>>, vector<16x128xf32>
    tpu.vector_store %arg7[%c0_26, %c0_27], %21 {strides = array<i32>} : memref<16x128xf32, #tpu.memory_space<vmem>>, vector<16x128xf32>,
    %c2_i32 = arith.constant 2 : i32
    %23 = arith.cmpi eq, %arg2, %c2_i32 : i32
    %24 = arith.extui %23 : i1 to i32
    %c0_i32_28 = arith.constant 0 : i32
    %25 = arith.cmpi ne, %24, %c0_i32_28 : i32
    scf.if %25 {
      %c0_29 = arith.constant 0 : index
      %c0_30 = arith.constant 0 : index
      %26 = vector.load %arg7[%c0_29, %c0_30] : memref<16x128xf32, #tpu.memory_space<vmem>>, vector<16x128xf32>
      %c0_31 = arith.constant 0 : index
      %c0_32 = arith.constant 0 : index
      %27 = vector.load %arg5[%c0_31, %c0_32] : memref<1x128xf32, #tpu.memory_space<vmem>>, vector<1x128xf32>
      %28 = vector.broadcast %27 : vector<1x128xf32> to vector<16x128xf32>
      %29 = arith.addf %26, %28 : vector<16x128xf32>
      %cst_33 = arith.constant 0.000000e+00 : f32
      %30 = vector.broadcast %cst_33 : f32 to vector<16x128xf32>
      %31 = arith.maximumf %29, %30 : vector<16x128xf32>
      %32 = arith.truncf %31 : vector<16x128xf32> to vector<16x128xbf16>
      %c0_34 = arith.constant 0 : index
      %c0_35 = arith.constant 0 : index
      %c0_36 = arith.constant 0 : index
      %c0_37 = arith.constant 0 : index
      %33 = vector.load %arg6[%c0_34, %c0_35, %c0_36, %c0_37] : memref<1x1x16x128xbf16, #tpu.memory_space<vmem>>, vector<1x1x16x128xbf16>
      %34 = vector.shape_cast %33 : vector<1x1x16x128xbf16> to vector<16x128xbf16>
      %35 = vector.shape_cast %32 : vector<16x128xbf16> to vector<1x1x16x128xbf16>
      tpu.vector_store %arg6[%c0_34, %c0_35, %c0_36, %c0_37], %35 {strides = array<i32>} : memref<1x1x16x128xbf16, #tpu.memory_space<vmem>>, vector<1x1x16x128xbf16>,
    } else {
    }
    return
  }
  func.func @transform_0(%arg0: i32, %arg1: i32, %arg2: i32) -> (i32, i32, i32, i32) {
    %c1_i32 = arith.constant 1 : i32
    %0 = arith.muli %arg1, %c1_i32 : i32
    %1 = arith.addi %0, %arg2 : i32
    %c0_i32 = arith.constant 0 : i32
    %c0_i32_0 = arith.constant 0 : i32
    %c0_i32_1 = arith.constant 0 : i32
    return %arg0, %1, %c0_i32, %c0_i32_0 : i32, i32, i32, i32
  }
  func.func @transform_1(%arg0: i32, %arg1: i32, %arg2: i32) -> (i32, i32, i32, i32) {
    %c0_i32 = arith.constant 0 : i32
    %c0_i32_0 = arith.constant 0 : i32
    %c0_i32_1 = arith.constant 0 : i32
    %c0_i32_2 = arith.constant 0 : i32
    return %arg2, %c0_i32, %c0_i32_0, %c0_i32_1 : i32, i32, i32, i32
  }
  func.func @transform_2(%arg0: i32, %arg1: i32, %arg2: i32) -> (i32, i32) {
    %c0_i32 = arith.constant 0 : i32
    %c0_i32_0 = arith.constant 0 : i32
    %c0_i32_1 = arith.constant 0 : i32
    return %c0_i32, %c0_i32_0 : i32, i32
  }
  func.func @transform_3(%arg0: i32, %arg1: i32, %arg2: i32) -> (i32, i32, i32, i32) {
    %c0_i32 = arith.constant 0 : i32
    %c0_i32_0 = arith.constant 0 : i32
    %c0_i32_1 = arith.constant 0 : i32
    return %arg0, %arg1, %c0_i32, %c0_i32_0 : i32, i32, i32, i32
  }
}

</mosaic_0001>

<llo_original>
// kernel: tpu_custom_call.1
$region0: #{tpu_custom_call.1}
  #allocation0 [shape = 'u32[]', space=smem, size = 0x4, offset = 0x4, fixed_abs, tag = 'smem constant byte address 0x4 - core index']
  #allocation1 [shape = 'u32[72,128]{1,0:T(1,128)}', space=vmem, size = 0x9000, scoped, tag = 'internal scratch']
  #allocation2 [shape = 'f32[16,128]{1,0:T(8,128)}', space=vmem, size = 0x2000, scoped, tag = 'scratch operand']
  %s0 = inlined_call_operand.vmem [shape: bf16[2,18,18,8], index: 0, kind: input, shape index: {}]
  %s1 = inlined_call_operand.vmem [shape: bf16[3,3,8,128], index: 1, kind: input, shape index: {}]
  %s2 = inlined_call_operand.vmem [shape: f32[1,128], index: 2, kind: input, shape index: {}]
  %s3 = inlined_call_operand.hbm [shape: bf16[2,16,16,128], index: 3, kind: output, shape index: {}]
  %s4 = sld [smem:[#allocation0]]
  $region53: #{tpu_custom_call.1} parent=0
    _
  %s6 = ssub.s32 1, %s4
  %s7 = scalar_select 0, %s6, %s4
  $region1: #{tpu_custom_call.1} parent=0
    #allocation3 [shape = 'u8[8192]{0}', space=vmem, size = 0x2000, scoped, tag = 'output window, operand 0']
    #allocation4 [shape = 's32[2]{0}', space=sflag, size = 0x8, scoped, tag = 'scoped memory for tpu_custom_call.1']
    %8 = vsyncpa [#allocation4], 0
    %s9 = scalar_lea.sflag [#allocation4], 1
    %10 = vsyncpa %s9, 0
    loop: start=0, step=1, limit=98
    $region2: #{tpu_custom_call.1} parent=1 // loop_pre_header
      _
    $region3: #{tpu_custom_call.1} parent=1 // loop_header
      %s12 = sphi 0, %s16
      %p13 = scmp.ge.s32.totalorder %s12, 98
      %s19 = sphi 0, %s38
      %s20 = sphi 0, %s34
      %s21 = sphi 0, %s30
      %s22 = sphi 0, %s19
      %s23 = sphi 0, %s20
      %s24 = sphi 0, %s21
      %s25 = sphi 0, %s22
      %s26 = sphi 0, %s23
      %s27 = sphi 0, %s24
      %s45 = sphi 0, %s47
      %s48 = sphi 0, %s45
      %s49 = sphi 0, %s48
      %s65 = sphi 0, %s49
      %s71 = sphi 0, %s73
      %s74 = sphi 0, %s71
      %s75 = sphi 0, %s74
      %s91 = sphi 0, %s75
      %s95 = sphi 0, %s95
      %s97 = sphi 0, %s95
      %s98 = sphi 0, %s97
      %s112 = sphi 0, %s98
      %s120 = sphi 0, %s122
      %s123 = sphi 0, %s120
      %s124 = sphi 0, %s123
      %s140 = sphi 0, %s124
    $region4: #{tpu_custom_call.1} parent=1 // loop_header_branch
      %15 = sbr.rel (%p13) target = $region8
    $region5: #{tpu_custom_call.1} parent=1 // loop_body
      %s17 = ssub.s32 %s12, 1
      %s18 = ssub.s32 %s12, 2
      %s28 = sadd.s32 1, %s21
      %p29 = scmp.ge.s32.totalorder %s28, 3
      %s30 = scalar_select %p29, 0, %s28
      %s31 = sadd.s32 1, %s20
      %s32 = scalar_select %p29, %s31, %s20
      %p33 = scmp.ge.s32.totalorder %s32, 16
      %s34 = scalar_select %p33, 0, %s32
      %s35 = sadd.s32 1, %s19
      %s36 = scalar_select %p33, %s35, %s19
      %p37 = scmp.ge.s32.totalorder %s36, 2
      %s38 = scalar_select %p37, 0, %s36
      %s39 = sadd.s32 %s20, %s21
      %s40 = sadd.s32 %s34, %s30
      %s41 = ssub.s32 %s19, %s38
      %s42 = ssub.s32 %s39, %s40
      %s43 = sor.u32 %s41, %s42
      %p44 = scmp.eq.s32.totalorder %s43, 0
      %s46 = sadd.s32 %s45, 1
      %s47 = scalar_select %p44, %s45, %s46
      %p50 = pneg %p44
      %p51 = scmp.eq.s32.totalorder %s12, 95
      %p52 = por %p50, %p51
      %p53 = scmp.ne.s32.totalorder %s45, %s48
      %p54 = scmp.eq.s32.totalorder %s12, 0
      %p55 = por %p53, %p54
      %p56 = scmp.ne.s32.totalorder %s45, %s48
      %p57 = scmp.eq.s32.totalorder %s17, 95
      %p58 = por %p56, %p57
      %p59 = scmp.ne.s32.totalorder %s48, %s49
      %p60 = scmp.eq.s32.totalorder %s17, 0
      %p61 = por %p59, %p60
      %p62 = scmp.ne.s32.totalorder %s48, %s49
      %p63 = scmp.eq.s32.totalorder %s18, 95
      %p64 = por %p62, %p63
      %p66 = scmp.ne.s32.totalorder %s49, %s65
      %p67 = scmp.eq.s32.totalorder %s18, 0
      %p68 = por %p66, %p67
      %s69 = ssub.s32 %s21, %s30
      %p70 = scmp.eq.s32.totalorder %s69, 0
      %s72 = sadd.s32 %s71, 1
      %s73 = scalar_select %p70, %s71, %s72
      %p76 = pneg %p70
      %p77 = scmp.eq.s32.totalorder %s12, 95
      %p78 = por %p76, %p77
      %p79 = scmp.ne.s32.totalorder %s71, %s74
      %p80 = scmp.eq.s32.totalorder %s12, 0
      %p81 = por %p79, %p80
      %p82 = scmp.ne.s32.totalorder %s71, %s74
      %p83 = scmp.eq.s32.totalorder %s17, 95
      %p84 = por %p82, %p83
      %p85 = scmp.ne.s32.totalorder %s74, %s75
      %p86 = scmp.eq.s32.totalorder %s17, 0
      %p87 = por %p85, %p86
      %p88 = scmp.ne.s32.totalorder %s74, %s75
      %p89 = scmp.eq.s32.totalorder %s18, 95
      %p90 = por %p88, %p89
      %p92 = scmp.ne.s32.totalorder %s75, %s91
      %p93 = scmp.eq.s32.totalorder %s18, 0
      %p94 = por %p92, %p93
      %s96 = sadd.s32 %s95, 1
      %p99 = scmp.eq.s32.totalorder %s12, 95
      %p100 = scmp.ne.s32.totalorder %s95, %s97
      %p101 = scmp.eq.s32.totalorder %s12, 0
      %p102 = por %p100, %p101
      %p103 = scmp.ne.s32.totalorder %s95, %s97
      %p104 = scmp.eq.s32.totalorder %s17, 95
      %p105 = por %p103, %p104
      %p106 = scmp.ne.s32.totalorder %s97, %s98
      %p107 = scmp.eq.s32.totalorder %s17, 0
      %p108 = por %p106, %p107
      %p109 = scmp.ne.s32.totalorder %s97, %s98
      %p110 = scmp.eq.s32.totalorder %s18, 95
      %p111 = por %p109, %p110
      %p113 = scmp.ne.s32.totalorder %s98, %s112
      %p114 = scmp.eq.s32.totalorder %s18, 0
      %p115 = por %p113, %p114
      %s116 = ssub.s32 %s19, %s38
      %s117 = ssub.s32 %s20, %s34
      %s118 = sor.u32 %s116, %s117
      %p119 = scmp.eq.s32.totalorder %s118, 0
      %s121 = sadd.s32 %s120, 1
      %s122 = scalar_select %p119, %s120, %s121
      %p125 = pneg %p119
      %p126 = scmp.eq.s32.totalorder %s12, 95
      %p127 = por %p125, %p126
      %p128 = scmp.ne.s32.totalorder %s120, %s123
      %p129 = scmp.eq.s32.totalorder %s12, 0
      %p130 = por %p128, %p129
      %p131 = scmp.ne.s32.totalorder %s120, %s123
      %p132 = scmp.eq.s32.totalorder %s17, 95
      %p133 = por %p131, %p132
      %p134 = scmp.ne.s32.totalorder %s123, %s124
      %p135 = scmp.eq.s32.totalorder %s17, 0
      %p136 = por %p134, %p135
      %p137 = scmp.ne.s32.totalorder %s123, %s124
      %p138 = scmp.eq.s32.totalorder %s18, 95
      %p139 = por %p137, %p138
      %p141 = scmp.ne.s32.totalorder %s124, %s140
      %p142 = scmp.eq.s32.totalorder %s18, 0
      %p143 = por %p141, %p142
      %p144 = scmp.le.s32.totalorder 1, %s12
      %p145 = scmp.lt.s32.totalorder %s12, 97
      %p146 = pnand %p144, %p145
      %p147 = pneg %p146
      // Predicated region
      $region9: #{tpu_custom_call.1} parent=5 // pred_check
        _
      $region10: #{tpu_custom_call.1} parent=5 // pred_check_branch
        %149 = sbr.rel (%p146) target = $region12
      $region11: #{tpu_custom_call.1} parent=5 // pred_region
        %s150 = ssub.s32 %s12, 1
        // Predicated region
        $region13: #{tpu_custom_call.1} parent=11 // pred_check
          %p151 = pneg %p108
        $region14: #{tpu_custom_call.1} parent=11 // pred_check_branch
          %153 = sbr.rel (%p151) target = $region16
        $region15: #{tpu_custom_call.1} parent=11 // pred_region
          _
        $region16: #{tpu_custom_call.1} parent=11 // pred_fallthru
          _
      $region12: #{tpu_custom_call.1} parent=5 // pred_fallthru
        _
      %p154 = scmp.lt.s32.totalorder %s12, 96
      // Predicated region
      $region17: #{tpu_custom_call.1} parent=5 // pred_check
        %p155 = pneg %p154
      $region18: #{tpu_custom_call.1} parent=5 // pred_check_branch
        %157 = sbr.rel (%p155) target = $region20
      $region19: #{tpu_custom_call.1} parent=5 // pred_region
        // Predicated region
        $region21: #{tpu_custom_call.1} parent=19 // pred_check
          %p158 = pneg %p55
        $region22: #{tpu_custom_call.1} parent=19 // pred_check_branch
          %160 = sbr.rel (%p158) target = $region24
        $region23: #{tpu_custom_call.1} parent=19 // pred_region
          %s161 = sadd.s32 %s20, %s21
          %p162 = scmp.lt.s32.totalorder %s19, 1
          %s163 = scalar_select %p162, %s19, 1
          %p164 = scmp.lt.s32.totalorder %s161, 17
          %s165 = scalar_select %p164, %s161, 17
          %s166 = smul.addr %s165, 3
          %s167 = smul.addr %s163, 54
          %s168 = sadd.s32 %s166, %s167
          %s169 = smul.addr %s168, 4
          %s170 = scalar_lea.vmem %s0, %s169
          %s171 = sadd.s32 %s20, %s21
        $region24: #{tpu_custom_call.1} parent=19 // pred_fallthru
          _
        // Predicated region
        $region25: #{tpu_custom_call.1} parent=19 // pred_check
          %p172 = pneg %p81
        $region26: #{tpu_custom_call.1} parent=19 // pred_check_branch
          %174 = sbr.rel (%p172) target = $region28
        $region27: #{tpu_custom_call.1} parent=19 // pred_region
          %p175 = scmp.lt.s32.totalorder %s21, 2
          %s176 = scalar_select %p175, %s21, 2
          %s177 = smul.addr %s176, 3
          %s178 = smul.addr %s177, 4
          %s179 = scalar_lea.vmem %s1, %s178
        $region28: #{tpu_custom_call.1} parent=19 // pred_fallthru
          _
      $region20: #{tpu_custom_call.1} parent=5 // pred_fallthru
        _
      %p180 = scmp.le.s32.totalorder 1, %s12
      %p181 = scmp.lt.s32.totalorder %s12, 97
      %p182 = pnand %p180, %p181
      %p183 = pneg %p182
      // Predicated region
      $region29: #{tpu_custom_call.1} parent=5 // pred_check
        _
      $region30: #{tpu_custom_call.1} parent=5 // pred_check_branch
        %185 = sbr.rel (%p182) target = $region32
      $region31: #{tpu_custom_call.1} parent=5 // pred_region
        %s186 = ssub.s32 %s12, 1
        %s187 = sadd.s32 %s23, %s24
        %p188 = scmp.lt.s32.totalorder %s22, 1
        %s189 = scalar_select %p188, %s22, 1
        %p190 = scmp.lt.s32.totalorder %s187, 17
        %s191 = scalar_select %p190, %s187, 17
        %s192 = smul.addr %s191, 3
        %s193 = smul.addr %s189, 54
        %s194 = sadd.s32 %s192, %s193
        %s195 = smul.addr %s194, 4
        %s196 = scalar_lea.vmem %s0, %s195
        %p197 = pneg %p61
        %p198 = pneg %p58
        %p199 = scmp.lt.s32.totalorder %s24, 2
        %s200 = scalar_select %p199, %s24, 2
        %s201 = smul.addr %s200, 3
        %s202 = smul.addr %s201, 4
        %s203 = scalar_lea.vmem %s1, %s202
        %p204 = pneg %p87
        %p205 = pneg %p84
        %p206 = pneg %p108
        %p207 = pneg %p105
        %p208 = pneg %p136
        %p209 = pneg %p133
        %s210 = sand.u32 %s123, 1
        %s211 = scalar_lea.sflag [#allocation4], %s210
        %s212 = sand.u32 %s123, 1
        %s213 = smul.addr %s212, 8
        %s214 = scalar_lea.vmem [#allocation3], %s213
        %s215 = sadd.s32 %s23, %s24
        %p216 = scmp.lt.s32.totalorder %s22, 1
        %s217 = scalar_select %p216, %s22, 1
        %p218 = scmp.lt.s32.totalorder %s215, 17
        %s219 = scalar_select %p218, %s215, 17
        %s220 = smul.addr %s219, 3
        %s221 = smul.addr %s217, 54
        %s222 = sadd.s32 %s220, %s221
        %s223 = smul.addr %s222, 4
        %s224 = scalar_lea.vmem %s0, %s223
        %s225 = sadd.s32 %s23, %s24
        %p226 = scmp.lt.s32.totalorder %s24, 2
        %s227 = scalar_select %p226, %s24, 2
        %s228 = smul.addr %s227, 3
        %s229 = smul.addr %s228, 4
        %s230 = scalar_lea.vmem %s1, %s229
        %p232 = scmp.eq.s32.totalorder %s24, 0
        // Predicated region
        $region33: #{tpu_custom_call.1} parent=31 // pred_check
          %p233 = pneg %p232
        $region34: #{tpu_custom_call.1} parent=31 // pred_check_branch
          %235 = sbr.rel (%p233) target = $region36
        $region35: #{tpu_custom_call.1} parent=31 // pred_region
          %236 = vst [vmem:[#allocation2] sm:$0xff] 0.0
          %237 = vst [vmem:[#allocation2 + $0x8] sm:$0xff] 0.0
        $region36: #{tpu_custom_call.1} parent=31 // pred_fallthru
          _
        %v238 = vld [vmem:[#allocation2] sm:$0xff]
        %v239 = vld [vmem:[#allocation2 + $0x8] sm:$0xff]
        %v240 = vld [vmem:[%s224] sm:$0xf]
        %v241 = vld [vmem:[%s224 + $0x4] sm:$0xf]
        %v242 = vld [vmem:[%s230] sm:$0xf]
        %v243 = vld [vmem:[%s224 + $0x8] sm:$0x1]
        %s244 = scalar_lea.vmem %s230, 4
        %v245 = vld [vmem:[%s244] sm:$0xf]
        %v249 = vunpack.c.l.b16 %v240
        %v250 = vunpack.c.l.b16 %v241
        %v251 = vunpack.c.l.b16 %v243
        %v252 = vpack.c.b16 %v250, %v249
        %v253 = vpack.c.b16 %v251, %v251
        %vm254 = vsmask.f32 7424
        %v256 = vshrl.u32 %v252, 16
        %v258 = vshll.u32 %v252, 16
        %v260 = vrot.slane %v258, 1
        %v261 = vor.u32 %v256, %v260
        %v263 = vshll.u32 %v253, 16
        %v265 = vrot.slane %v263, 1
        %v266 = vsel %vm254, %v261, %v265
        %vm267 = vcmask 64512
        %v269 = vsel %vm267, %v266, 0
        %vm271 = vcmask 1043456
        %v273 = vsel %vm271, %v245, 0
        %275 = vmatpush.bf16.msra.mxu0 0
        %276 = vmatpush.bf16.msra.mxu0 0
        %277 = vmatpush.bf16.msra.mxu0 0
        %278 = vmatpush.bf16.msra.mxu0 0
        %279 = vmatpush.bf16.msra.mxu0 0
        %280 = vmatpush.bf16.msra.mxu0 0
        %281 = vmatpush.bf16.msra.mxu0 0
        %282 = vmatpush.bf16.msra.mxu0 %v273
        %283 = vmatmul.bf16.gmra.mxu0 %v269
        %v284 = vpop.f32.mrf.mxu0
        %v285 = vadd.f32 0.0, %v284
        %v286 = vpop.f32.mrf.mxu0
        %v287 = vadd.f32 0.0, %v286
        %288 = vdwg.mxu0
        %v289 = vsel %vm267, %v252, 0
        %v292 = vsel %vm271, %v242, 0
        %294 = vmatpush.bf16.msra.mxu0 0
        %295 = vmatpush.bf16.msra.mxu0 0
        %296 = vmatpush.bf16.msra.mxu0 0
        %297 = vmatpush.bf16.msra.mxu0 0
        %298 = vmatpush.bf16.msra.mxu0 0
        %299 = vmatpush.bf16.msra.mxu0 0
        %300 = vmatpush.bf16.msra.mxu0 0
        %301 = vmatpush.bf16.msra.mxu0 %v292
        %302 = vmatmul.bf16.gmra.mxu0 %v289
        %v303 = vpop.f32.mrf.mxu0
        %v304 = vadd.f32 %v285, %v303
        %v305 = vpop.f32.mrf.mxu0
        %v306 = vadd.f32 %v287, %v305
        %307 = vdwg.mxu0
        %v308 = vld [vmem:[%s224] sm:$0xe]
        %s309 = scalar_lea.vmem %s230, 8
        %v310 = vld [vmem:[%s309] sm:$0xf]
        %v312 = vunpack.c.l.b16 %v308
        %v313 = vpack.c.b16 %v250, %v312
        %vm314 = vcmask 1046528
        %v315 = vrot.slane %v313, 1
        %v316 = vrot.slane %v253, 1
        %v317 = vsel %vm314, %v315, %v316
        %v319 = vsel %vm267, %v317, 0
        %v322 = vsel %vm271, %v310, 0
        %324 = vmatpush.bf16.msra.mxu0 0
        %325 = vmatpush.bf16.msra.mxu0 0
        %326 = vmatpush.bf16.msra.mxu0 0
        %327 = vmatpush.bf16.msra.mxu0 0
        %328 = vmatpush.bf16.msra.mxu0 0
        %329 = vmatpush.bf16.msra.mxu0 0
        %330 = vmatpush.bf16.msra.mxu0 0
        %331 = vmatpush.bf16.msra.mxu0 %v322
        %332 = vmatmul.bf16.gmra.mxu0 %v319
        %v333 = vpop.f32.mrf.mxu0
        %v334 = vadd.f32 0.0, %v333
        %v335 = vpop.f32.mrf.mxu0
        %v336 = vadd.f32 0.0, %v335
        %337 = vdwg.mxu0
        %v338 = vadd.f32 %v304, %v334
        %v339 = vadd.f32 %v306, %v336
        %v340 = vadd.f32 %v238, %v338
        %v341 = vadd.f32 %v239, %v339
        %342 = vst [vmem:[#allocation2] sm:$0xff] %v340
        %343 = vst [vmem:[#allocation2 + $0x8] sm:$0xff] %v341
        %p344 = scmp.eq.s32.totalorder %s24, 2
        // Predicated region
        $region37: #{tpu_custom_call.1} parent=31 // pred_check
          %p345 = pneg %p344
        $region38: #{tpu_custom_call.1} parent=31 // pred_check_branch
          %347 = sbr.rel (%p345) target = $region40
        $region39: #{tpu_custom_call.1} parent=31 // pred_region
          %v348 = vld [vmem:[#allocation2] sm:$0xff]
          %v349 = vld [vmem:[#allocation2 + $0x8] sm:$0xff]
          %v350 = vld [vmem:[%s2] sm:$0x1]
          %v352 = vperm.slane %v350, 0
          %v354 = vadd.f32 %v348, %v352
          %v355 = vadd.f32 %v349, %v352
          %v356 = vmax.f32 %v354, 0.0
          %v357 = vmax.f32 %v355, 0.0
          %v358 = vpack.c.bf16 %v356, %v356
          %v359 = vpack.c.bf16 %v357, %v357
          %360 = vst [vmem:[%s214] sm:$0xf] %v358
          %361 = vst [vmem:[%s214 + $0x4] sm:$0xf] %v359
        $region40: #{tpu_custom_call.1} parent=31 // pred_fallthru
          _
        %s362 = sand.u32 %s123, 1
        %s363 = scalar_lea.sflag [#allocation4], %s362
        %s364 = sand.u32 %s123, 1
        %s365 = smul.addr %s364, 8
        %s366 = scalar_lea.vmem [#allocation3], %s365
        // Predicated region
        $region41: #{tpu_custom_call.1} parent=31 // pred_check
          %p367 = pneg %p133
        $region42: #{tpu_custom_call.1} parent=31 // pred_check_branch
          %369 = sbr.rel (%p367) target = $region44
        $region43: #{tpu_custom_call.1} parent=31 // pred_region
          %371 = vsyncadd %s363, 0
          %s372 = smul.addr %s23, 2
          %s373 = smul.addr %s22, 32
          %s374 = sadd.s32 %s372, %s373
          %s375 = smul.addr %s374, 4
          %s376 = scalar_lea.hbm %s3, %s375
          %s377 = sshll.u32 %s366, 4
          %s378 = int_to_ptr.vmem [resolvable:$true] %s377
          %s379 = sshll.u32 %s376, 4
          %s380 = int_to_ptr.hbm [resolvable:$true] %s379
          %385 = dma.vmem_to_hbm [thread:$0]  %s378, 128, %s380, %s363, 64, 64, 4
        $region44: #{tpu_custom_call.1} parent=31 // pred_fallthru
          _
      $region32: #{tpu_custom_call.1} parent=5 // pred_fallthru
        _
      %p386 = scmp.le.s32.totalorder 2, %s12
      // Predicated region
      $region45: #{tpu_custom_call.1} parent=5 // pred_check
        %p387 = pneg %p386
      $region46: #{tpu_custom_call.1} parent=5 // pred_check_branch
        %389 = sbr.rel (%p387) target = $region48
      $region47: #{tpu_custom_call.1} parent=5 // pred_region
        %s390 = ssub.s32 %s12, 2
        // Predicated region
        $region49: #{tpu_custom_call.1} parent=47 // pred_check
          %p391 = pneg %p139
        $region50: #{tpu_custom_call.1} parent=47 // pred_check_branch
          %393 = sbr.rel (%p391) target = $region52
        $region51: #{tpu_custom_call.1} parent=47 // pred_region
          %s394 = sand.u32 %s124, 1
          %s395 = scalar_lea.sflag [#allocation4], %s394
          %s396 = sand.u32 %s124, 1
          %s397 = smul.addr %s396, 8
          %s398 = scalar_lea.vmem [#allocation3], %s397
          %400 = dma.done %s395, 128
        $region52: #{tpu_custom_call.1} parent=47 // pred_fallthru
          _
      $region48: #{tpu_custom_call.1} parent=5 // pred_fallthru
        _
    $region6: #{tpu_custom_call.1} parent=1 // loop_footer
      %s16 = sadd.s32 1, %s12
    $region7: #{tpu_custom_call.1} parent=1 // loop_footer_branch
      %11 = sbr.rel target = $region3
    $region8: #{tpu_custom_call.1} parent=1 // loop_exit
      _
    %401 = vsyncpa [#allocation4], 1
    %s402 = scalar_lea.sflag [#allocation4], 1
    %403 = vsyncpa %s402, 1

</llo_original>
